<compile_context>
chip_gen: v5e
topology: v5e:2x2
jax: 0.10.0
libtpu: 0.0.40
codegen_flags: <defaults>
</compile_context>

<pallas_src>
import jax
import jax.numpy as jnp
from jax.experimental import pallas as pl
from jax.experimental.pallas import tpu as pltpu


LANE = 128
SUBLANE = 8


def _cdiv(a, b):
    return -(-a // b)


# ---------------------------------------------------------------------------
# elementwise helpers (pure-JAX reference only)
# ---------------------------------------------------------------------------
def _spu(x):
    return jnp.where(x > 0, x * x - 0.5, jax.nn.sigmoid(-x) - 1.0)


def _dsig(x):
    s = jax.nn.sigmoid(x)
    return -s * (1.0 - s)


# ---------------------------------------------------------------------------
# Pallas kernel: all DPSPU outputs in one elementwise pass over a (T, 128) tile
# ---------------------------------------------------------------------------
def dpspu_kernel(lb_ref, ub_ref, lam_ref, gamma_ref,
                 lb_out_ref, ub_out_ref, slb_ref, sub_ref):
    lb = lb_ref[...]
    ub = ub_ref[...]
    lam = lam_ref[...]
    gamma = gamma_ref[...]

    mask_1 = lb >= 0.0          # case 1: lb >= 0
    mask_2 = ub <= 0.0          # case 2: ub <= 0
    mask_3 = jnp.logical_not(jnp.logical_or(mask_1, mask_2))  # lb < 0 < ub

    # shared transcendentals (EUP): compute each sigmoid once and reuse
    sig_neg_lb = jax.nn.sigmoid(-lb)
    sig_neg_ub = jax.nn.sigmoid(-ub)
    spu_lb = jnp.where(lb > 0, lb * lb - 0.5, sig_neg_lb - 1.0)
    spu_ub = jnp.where(ub > 0, ub * ub - 0.5, sig_neg_ub - 1.0)
    # dsig(x) = -sigmoid(x)*(1-sigmoid(x)) = -(1 - sigmoid(-x)) * sigmoid(-x)
    dsig_lb = -(1.0 - sig_neg_lb) * sig_neg_lb

    # ----- case 1: lb >= 0 -----
    # 2 / (1 + exp(lam)) == 2 * sigmoid(-lam)
    slope_lower_1 = 2.0 * lb + 2.0 * jax.nn.sigmoid(-lam) * (ub - lb)
    half_sl1 = slope_lower_1 * 0.5
    spu_half_sl1 = jnp.where(half_sl1 > 0,
                             half_sl1 * half_sl1 - 0.5,
                             jax.nn.sigmoid(-half_sl1) - 1.0)
    bias_lower_1 = spu_half_sl1 - slope_lower_1 * slope_lower_1 * 0.5
    slope_upper_1 = ub + lb
    bias_upper_1 = spu_lb - slope_upper_1 * lb

    # ----- case 2: ub <= 0 -----  (guard denominator for inactive lanes)
    denom_2 = jnp.where(mask_2, lb - ub, 1.0)
    slope_lower_2 = (spu_lb - spu_ub) / denom_2
    bias_lower_2 = spu_lb - slope_lower_2 * lb
    slope_upper_2 = dsig_lb
    bias_upper_2 = spu_lb - slope_upper_2 * lb

    # ----- case 3: lb < 0 < ub -----  (guard denominators for inactive lanes)
    denom_3 = jnp.where(mask_3, ub - lb, 1.0)
    slope_upper_3 = (spu_ub - spu_lb) / denom_3
    bias_upper_3 = spu_ub - slope_upper_3 * ub
    bias_tangent = spu_lb - dsig_lb * lb
    take_chord = dsig_lb < slope_upper_3
    slope_upper_3f = jnp.where(take_chord, slope_upper_3, dsig_lb)
    bias_upper_3f = jnp.where(take_chord, bias_upper_3, bias_tangent)

    denom_lb = jnp.where(mask_3, lb, 1.0)
    slope_negative = (spu_lb + 0.5) / denom_lb
    slope_positive = 2.0 * ub
    # 1 / (1 + exp(gamma)) == sigmoid(-gamma)
    slope_lower_3f = slope_negative + jax.nn.sigmoid(-gamma) * (
        slope_positive - slope_negative)
    bias_lower_3f = jnp.where(slope_lower_3f > 0,
                              -slope_lower_3f * slope_lower_3f * 0.25 - 0.5,
                              -0.5)

    # ----- select active case with nested vsel (no mask-multiply blends) -----
    def sel(v1, v2, v3):
        return jnp.where(mask_1, v1, jnp.where(mask_2, v2, v3))

    lb_out_ref[...] = sel(spu_lb, spu_ub, jnp.full_like(lb, -0.5))
    ub_out_ref[...] = sel(spu_ub, spu_lb,
                          jnp.where(spu_ub > spu_lb, spu_ub, spu_lb))

    # packed symbolic bounds: plane 0 = slope, plane 1 = bias
    slb_ref[0, :, :] = sel(slope_lower_1, slope_lower_2, slope_lower_3f)
    slb_ref[1, :, :] = sel(bias_lower_1, bias_lower_2, bias_lower_3f)
    sub_ref[0, :, :] = sel(slope_upper_1, slope_upper_2, slope_upper_3f)
    sub_ref[1, :, :] = sel(bias_upper_1, bias_upper_2, bias_upper_3f)


# ---------------------------------------------------------------------------
# wrapper: pad/reshape to (rows, 128), tiled grid over rows, unpad results
# ---------------------------------------------------------------------------
def dpspu_forward(lb, ub, lam, gamma, tile_rows=512):
    n = lb.shape[0]

    rows = _cdiv(n, LANE)
    rows = _cdiv(rows, SUBLANE) * SUBLANE          # sublane-dense
    tile_rows = max(SUBLANE, min(tile_rows, rows))
    tile_rows = _cdiv(tile_rows, SUBLANE) * SUBLANE
    rows = _cdiv(rows, tile_rows) * tile_rows      # whole tiles only
    n_pad = rows * LANE

    def pad2d(v, fill):
        v = v.astype(jnp.float32)
        v = jnp.pad(v, (0, n_pad - n), constant_values=fill)
        return v.reshape(rows, LANE)

    # pad with a benign case-1 interval (lb=1 < ub=2); padded lanes are dropped.
    lb2 = pad2d(lb, 1.0)
    ub2 = pad2d(ub, 2.0)
    lam2 = pad2d(lam, 1.0)
    gamma2 = pad2d(gamma, 1.0)

    grid = (rows // tile_rows,)
    vec_spec = pl.BlockSpec((tile_rows, LANE), lambda i: (i, 0))
    pack_spec = pl.BlockSpec((2, tile_rows, LANE), lambda i: (0, i, 0))

    new_lb2, new_ub2, slb3, sub3 = pl.pallas_call(
        dpspu_kernel,
        grid=grid,
        in_specs=[vec_spec, vec_spec, vec_spec, vec_spec],
        out_specs=[vec_spec, vec_spec, pack_spec, pack_spec],
        out_shape=[
            jax.ShapeDtypeStruct((rows, LANE), jnp.float32),
            jax.ShapeDtypeStruct((rows, LANE), jnp.float32),
            jax.ShapeDtypeStruct((2, rows, LANE), jnp.float32),
            jax.ShapeDtypeStruct((2, rows, LANE), jnp.float32),
        ],
        compiler_params=pltpu.CompilerParams(
            dimension_semantics=("parallel",)),
    )(lb2, ub2, lam2, gamma2)

    new_lb = new_lb2.reshape(-1)[:n]
    new_ub = new_ub2.reshape(-1)[:n]
    slb = slb3.reshape(2, -1)[:, :n]   # (2, N): [slope, bias]
    sub = sub3.reshape(2, -1)[:, :n]   # (2, N): [slope, bias]
    return new_lb, new_ub, slb, sub


# ---------------------------------------------------------------------------
# pure-JAX reference (mirrors the PyTorch forward exactly)
# ---------------------------------------------------------------------------
def dpspu_reference(lb, ub, lam, gamma):
    m1 = (lb >= 0).astype(jnp.float32)
    m2 = (ub <= 0).astype(jnp.float32)
    m3 = 1.0 - jnp.maximum(m1, m2)

    sl1 = 2 * lb + 2 / (1 + jnp.exp(lam)) * (ub - lb)
    bl1 = _spu(sl1 / 2) - sl1 ** 2 / 2
    su1 = ub + lb
    bu1 = _spu(lb) - su1 * lb

    sl2 = (_spu(lb) - _spu(ub)) / (lb - ub)
    bl2 = _spu(lb) - sl2 * lb
    su2 = _dsig(lb)
    bu2 = _spu(lb) - su2 * lb

    su3 = (_spu(ub) - _spu(lb)) / (ub - lb)
    bu3 = _spu(ub) - su3 * ub
    dlb = _dsig(lb)
    bt = _spu(lb) - dlb * lb
    su3f = jnp.where(dlb < su3, su3, dlb)
    bu3f = jnp.where(dlb < su3, bu3, bt)
    sn = (_spu(lb) + 0.5) / lb
    sp = 2 * ub
    sl3f = sn + 1 / (1 + jnp.exp(gamma)) * (sp - sn)
    bl3f = jnp.where(sl3f > 0, -sl3f ** 2 / 4 - 0.5, -0.5 * jnp.ones_like(sl3f))

    curr_slb = sl1 * m1 + sl2 * m2 + sl3f * m3
    curr_slb_bias = bl1 * m1 + bl2 * m2 + bl3f * m3
    curr_sub = su1 * m1 + su2 * m2 + su3f * m3
    curr_sub_bias = bu1 * m1 + bu2 * m2 + bu3f * m3

    new_lb = _spu(lb) * m1 + _spu(ub) * m2 - 0.5 * m3
    new_ub = (_spu(ub) * m1 + _spu(lb) * m2
              + jnp.where(_spu(ub) > _spu(lb), _spu(ub), _spu(lb)) * m3)
    slb = jnp.stack([curr_slb, curr_slb_bias], axis=0)
    sub = jnp.stack([curr_sub, curr_sub_bias], axis=0)
    return new_lb, new_ub, slb, sub


if __name__ == "__main__":
    in_features = 2000   # non-multiple of 128 to exercise padding; 2 row-tiles

    key = jax.random.PRNGKey(0)
    k1, k2 = jax.random.split(key)
    a = jax.random.normal(k1, (in_features,), jnp.float32) * 2.0
    b = jax.random.normal(k2, (in_features,), jnp.float32) * 2.0
    lb = jnp.minimum(a, b)
    ub = jnp.maximum(a, b)

    # parameters: deterministic init matching nn.Parameter(torch.ones(...))
    lam = jnp.ones((in_features,), jnp.float32)
    gamma = jnp.ones((in_features,), jnp.float32)
    theta = jnp.ones((in_features,), jnp.float32)  # unused in forward (as in PyTorch)

    # TODO(synk): x.save() / x.is_spu abstract-domain bookkeeping has no tensor
    # compute equivalent; only lb/ub/slb/sub are produced here.

    # tile_rows=8 keeps the demo small while exercising a multi-tile grid.
    new_lb, new_ub, slb, sub = dpspu_forward(lb, ub, lam, gamma, tile_rows=8)
    jax.block_until_ready((new_lb, new_ub, slb, sub))

    r_lb, r_ub, r_slb, r_sub = dpspu_reference(lb, ub, lam, gamma)
    assert jnp.allclose(new_lb, r_lb, atol=1e-5, rtol=1e-5)
    assert jnp.allclose(new_ub, r_ub, atol=1e-5, rtol=1e-5)
    assert jnp.allclose(slb, r_slb, atol=1e-5, rtol=1e-5)
    assert jnp.allclose(sub, r_sub, atol=1e-5, rtol=1e-5)

    print("KERNEL_OK")
</pallas_src>

<mosaic_0001>
module attributes {stable_mosaic.version = 11 : i64} {
  func.func @dpspu_kernel(%arg0: i32, %arg1: memref<8x128xf32, #tpu.memory_space<vmem>>, %arg2: memref<8x128xf32, #tpu.memory_space<vmem>>, %arg3: memref<8x128xf32, #tpu.memory_space<vmem>>, %arg4: memref<8x128xf32, #tpu.memory_space<vmem>>, %arg5: memref<8x128xf32, #tpu.memory_space<vmem>>, %arg6: memref<8x128xf32, #tpu.memory_space<vmem>>, %arg7: memref<2x8x128xf32, #tpu.memory_space<vmem>>, %arg8: memref<2x8x128xf32, #tpu.memory_space<vmem>>) attributes {dimension_semantics = [#tpu.dimension_semantics<parallel>], iteration_bounds = array<i64: 2>, scalar_prefetch = 0 : i64, scratch_operands = 0 : i64, tpu.core_type = #tpu.core_type<tc>, window_params = [{transform_indices = @transform_0, window_bounds = array<i64: 8, 128>}, {transform_indices = @transform_1, window_bounds = array<i64: 8, 128>}, {transform_indices = @transform_2, window_bounds = array<i64: 8, 128>}, {transform_indices = @transform_3, window_bounds = array<i64: 8, 128>}, {transform_indices = @transform_4, window_bounds = array<i64: 8, 128>}, {transform_indices = @transform_5, window_bounds = array<i64: 8, 128>}, {transform_indices = @transform_6, window_bounds = array<i64: 2, 8, 128>}, {transform_indices = @transform_7, window_bounds = array<i64: 2, 8, 128>}]} {
    %c0 = arith.constant 0 : index
    %c0_0 = arith.constant 0 : index
    %0 = vector.load %arg1[%c0, %c0_0] : memref<8x128xf32, #tpu.memory_space<vmem>>, vector<8x128xf32>
    %c0_1 = arith.constant 0 : index
    %c0_2 = arith.constant 0 : index
    %1 = vector.load %arg2[%c0_1, %c0_2] : memref<8x128xf32, #tpu.memory_space<vmem>>, vector<8x128xf32>
    %c0_3 = arith.constant 0 : index
    %c0_4 = arith.constant 0 : index
    %2 = vector.load %arg3[%c0_3, %c0_4] : memref<8x128xf32, #tpu.memory_space<vmem>>, vector<8x128xf32>
    %c0_5 = arith.constant 0 : index
    %c0_6 = arith.constant 0 : index
    %3 = vector.load %arg4[%c0_5, %c0_6] : memref<8x128xf32, #tpu.memory_space<vmem>>, vector<8x128xf32>
    %cst = arith.constant 0.000000e+00 : f32
    %4 = vector.broadcast %cst : f32 to vector<8x128xf32>
    %5 = arith.cmpf oge, %0, %4 : vector<8x128xf32>
    %cst_7 = arith.constant 0.000000e+00 : f32
    %6 = vector.broadcast %cst_7 : f32 to vector<8x128xf32>
    %7 = arith.cmpf ole, %1, %6 : vector<8x128xf32>
    %8 = arith.ori %5, %7 : vector<8x128xi1>
    %cst_8 = arith.constant dense<true> : vector<8x128xi1>
    %9 = arith.xori %8, %cst_8 : vector<8x128xi1>
    %cst_9 = arith.constant 0.000000e+00 : f32
    %10 = vector.broadcast %cst_9 : f32 to vector<8x128xf32>
    %11 = arith.subf %10, %0 : vector<8x128xf32>
    %12 = arith.negf %11 : vector<8x128xf32>
    %13 = math.exp %12 : vector<8x128xf32>
    %cst_10 = arith.constant 1.000000e+00 : f32
    %14 = vector.broadcast %cst_10 : f32 to vector<8x128xf32>
    %15 = arith.addf %14, %13 : vector<8x128xf32>
    %16 = arith.divf %14, %15 : vector<8x128xf32>
    %cst_11 = arith.constant 0.000000e+00 : f32
    %17 = vector.broadcast %cst_11 : f32 to vector<8x128xf32>
    %18 = arith.subf %17, %1 : vector<8x128xf32>
    %19 = arith.negf %18 : vector<8x128xf32>
    %20 = math.exp %19 : vector<8x128xf32>
    %cst_12 = arith.constant 1.000000e+00 : f32
    %21 = vector.broadcast %cst_12 : f32 to vector<8x128xf32>
    %22 = arith.addf %21, %20 : vector<8x128xf32>
    %23 = arith.divf %21, %22 : vector<8x128xf32>
    %cst_13 = arith.constant 0.000000e+00 : f32
    %24 = vector.broadcast %cst_13 : f32 to vector<8x128xf32>
    %25 = arith.cmpf ogt, %0, %24 : vector<8x128xf32>
    %26 = arith.mulf %0, %0 : vector<8x128xf32>
    %cst_14 = arith.constant 5.000000e-01 : f32
    %27 = vector.broadcast %cst_14 : f32 to vector<8x128xf32>
    %28 = arith.subf %26, %27 : vector<8x128xf32>
    %cst_15 = arith.constant 1.000000e+00 : f32
    %29 = vector.broadcast %cst_15 : f32 to vector<8x128xf32>
    %30 = arith.subf %16, %29 : vector<8x128xf32>
    %31 = arith.select %25, %28, %30 : vector<8x128xi1>, vector<8x128xf32>
    %cst_16 = arith.constant 0.000000e+00 : f32
    %32 = vector.broadcast %cst_16 : f32 to vector<8x128xf32>
    %33 = arith.cmpf ogt, %1, %32 : vector<8x128xf32>
    %34 = arith.mulf %1, %1 : vector<8x128xf32>
    %cst_17 = arith.constant 5.000000e-01 : f32
    %35 = vector.broadcast %cst_17 : f32 to vector<8x128xf32>
    %36 = arith.subf %34, %35 : vector<8x128xf32>
    %cst_18 = arith.constant 1.000000e+00 : f32
    %37 = vector.broadcast %cst_18 : f32 to vector<8x128xf32>
    %38 = arith.subf %23, %37 : vector<8x128xf32>
    %39 = arith.select %33, %36, %38 : vector<8x128xi1>, vector<8x128xf32>
    %cst_19 = arith.constant 1.000000e+00 : f32
    %40 = vector.broadcast %cst_19 : f32 to vector<8x128xf32>
    %41 = arith.subf %40, %16 : vector<8x128xf32>
    %cst_20 = arith.constant 0.000000e+00 : f32
    %42 = vector.broadcast %cst_20 : f32 to vector<8x128xf32>
    %43 = arith.subf %42, %41 : vector<8x128xf32>
    %44 = arith.mulf %43, %16 : vector<8x128xf32>
    %cst_21 = arith.constant 2.000000e+00 : f32
    %45 = vector.broadcast %cst_21 : f32 to vector<8x128xf32>
    %46 = arith.mulf %45, %0 : vector<8x128xf32>
    %cst_22 = arith.constant 0.000000e+00 : f32
    %47 = vector.broadcast %cst_22 : f32 to vector<8x128xf32>
    %48 = arith.subf %47, %2 : vector<8x128xf32>
    %49 = arith.negf %48 : vector<8x128xf32>
    %50 = math.exp %49 : vector<8x128xf32>
    %cst_23 = arith.constant 1.000000e+00 : f32
    %51 = vector.broadcast %cst_23 : f32 to vector<8x128xf32>
    %52 = arith.addf %51, %50 : vector<8x128xf32>
    %53 = arith.divf %51, %52 : vector<8x128xf32>
    %cst_24 = arith.constant 2.000000e+00 : f32
    %54 = vector.broadcast %cst_24 : f32 to vector<8x128xf32>
    %55 = arith.mulf %54, %53 : vector<8x128xf32>
    %56 = arith.subf %1, %0 : vector<8x128xf32>
    %57 = arith.mulf %55, %56 : vector<8x128xf32>
    %58 = arith.addf %46, %57 : vector<8x128xf32>
    %cst_25 = arith.constant 5.000000e-01 : f32
    %59 = vector.broadcast %cst_25 : f32 to vector<8x128xf32>
    %60 = arith.mulf %58, %59 : vector<8x128xf32>
    %cst_26 = arith.constant 0.000000e+00 : f32
    %61 = vector.broadcast %cst_26 : f32 to vector<8x128xf32>
    %62 = arith.cmpf ogt, %60, %61 : vector<8x128xf32>
    %63 = arith.mulf %60, %60 : vector<8x128xf32>
    %cst_27 = arith.constant 5.000000e-01 : f32
    %64 = vector.broadcast %cst_27 : f32 to vector<8x128xf32>
    %65 = arith.subf %63, %64 : vector<8x128xf32>
    %cst_28 = arith.constant 0.000000e+00 : f32
    %66 = vector.broadcast %cst_28 : f32 to vector<8x128xf32>
    %67 = arith.subf %66, %60 : vector<8x128xf32>
    %68 = arith.negf %67 : vector<8x128xf32>
    %69 = math.exp %68 : vector<8x128xf32>
    %cst_29 = arith.constant 1.000000e+00 : f32
    %70 = vector.broadcast %cst_29 : f32 to vector<8x128xf32>
    %71 = arith.addf %70, %69 : vector<8x128xf32>
    %72 = arith.divf %70, %71 : vector<8x128xf32>
    %cst_30 = arith.constant 1.000000e+00 : f32
    %73 = vector.broadcast %cst_30 : f32 to vector<8x128xf32>
    %74 = arith.subf %72, %73 : vector<8x128xf32>
    %75 = arith.select %62, %65, %74 : vector<8x128xi1>, vector<8x128xf32>
    %76 = arith.mulf %58, %58 : vector<8x128xf32>
    %cst_31 = arith.constant 5.000000e-01 : f32
    %77 = vector.broadcast %cst_31 : f32 to vector<8x128xf32>
    %78 = arith.mulf %76, %77 : vector<8x128xf32>
    %79 = arith.subf %75, %78 : vector<8x128xf32>
    %80 = arith.addf %1, %0 : vector<8x128xf32>
    %81 = arith.mulf %80, %0 : vector<8x128xf32>
    %82 = arith.subf %31, %81 : vector<8x128xf32>
    %83 = arith.subf %0, %1 : vector<8x128xf32>
    %cst_32 = arith.constant 1.000000e+00 : f32
    %84 = vector.broadcast %cst_32 : f32 to vector<8x128xf32>
    %85 = arith.select %7, %83, %84 : vector<8x128xi1>, vector<8x128xf32>
    %86 = arith.subf %31, %39 : vector<8x128xf32>
    %87 = arith.divf %86, %85 : vector<8x128xf32>
    %88 = arith.mulf %87, %0 : vector<8x128xf32>
    %89 = arith.subf %31, %88 : vector<8x128xf32>
    %90 = arith.mulf %44, %0 : vector<8x128xf32>
    %91 = arith.subf %31, %90 : vector<8x128xf32>
    %92 = arith.subf %1, %0 : vector<8x128xf32>
    %cst_33 = arith.constant 1.000000e+00 : f32
    %93 = vector.broadcast %cst_33 : f32 to vector<8x128xf32>
    %94 = arith.select %9, %92, %93 : vector<8x128xi1>, vector<8x128xf32>
    %95 = arith.subf %39, %31 : vector<8x128xf32>
    %96 = arith.divf %95, %94 : vector<8x128xf32>
    %97 = arith.mulf %96, %1 : vector<8x128xf32>
    %98 = arith.subf %39, %97 : vector<8x128xf32>
    %99 = arith.mulf %44, %0 : vector<8x128xf32>
    %100 = arith.subf %31, %99 : vector<8x128xf32>
    %101 = arith.cmpf olt, %44, %96 : vector<8x128xf32>
    %102 = arith.select %101, %96, %44 : vector<8x128xi1>, vector<8x128xf32>
    %103 = arith.select %101, %98, %100 : vector<8x128xi1>, vector<8x128xf32>
    %cst_34 = arith.constant 1.000000e+00 : f32
    %104 = vector.broadcast %cst_34 : f32 to vector<8x128xf32>
    %105 = arith.select %9, %0, %104 : vector<8x128xi1>, vector<8x128xf32>
    %cst_35 = arith.constant 5.000000e-01 : f32
    %106 = vector.broadcast %cst_35 : f32 to vector<8x128xf32>
    %107 = arith.addf %31, %106 : vector<8x128xf32>
    %108 = arith.divf %107, %105 : vector<8x128xf32>
    %cst_36 = arith.constant 2.000000e+00 : f32
    %109 = vector.broadcast %cst_36 : f32 to vector<8x128xf32>
    %110 = arith.mulf %109, %1 : vector<8x128xf32>
    %cst_37 = arith.constant 0.000000e+00 : f32
    %111 = vector.broadcast %cst_37 : f32 to vector<8x128xf32>
    %112 = arith.subf %111, %3 : vector<8x128xf32>
    %113 = arith.negf %112 : vector<8x128xf32>
    %114 = math.exp %113 : vector<8x128xf32>
    %cst_38 = arith.constant 1.000000e+00 : f32
    %115 = vector.broadcast %cst_38 : f32 to vector<8x128xf32>
    %116 = arith.addf %115, %114 : vector<8x128xf32>
    %117 = arith.divf %115, %116 : vector<8x128xf32>
    %118 = arith.subf %110, %108 : vector<8x128xf32>
    %119 = arith.mulf %117, %118 : vector<8x128xf32>
    %120 = arith.addf %108, %119 : vector<8x128xf32>
    %cst_39 = arith.constant 0.000000e+00 : f32
    %121 = vector.broadcast %cst_39 : f32 to vector<8x128xf32>
    %122 = arith.cmpf ogt, %120, %121 : vector<8x128xf32>
    %cst_40 = arith.constant 0.000000e+00 : f32
    %123 = vector.broadcast %cst_40 : f32 to vector<8x128xf32>
    %124 = arith.subf %123, %120 : vector<8x128xf32>
    %125 = arith.mulf %124, %120 : vector<8x128xf32>
    %cst_41 = arith.constant 2.500000e-01 : f32
    %126 = vector.broadcast %cst_41 : f32 to vector<8x128xf32>
    %127 = arith.mulf %125, %126 : vector<8x128xf32>
    %cst_42 = arith.constant 5.000000e-01 : f32
    %128 = vector.broadcast %cst_42 : f32 to vector<8x128xf32>
    %129 = arith.subf %127, %128 : vector<8x128xf32>
    %cst_43 = arith.constant -5.000000e-01 : f32
    %130 = vector.broadcast %cst_43 : f32 to vector<8x128xf32>
    %131 = arith.select %122, %129, %130 : vector<8x128xi1>, vector<8x128xf32>
    %cst_44 = arith.constant -5.000000e-01 : f32
    %132 = vector.broadcast %cst_44 : f32 to vector<8x128xf32>
    %133 = arith.select %7, %39, %132 : vector<8x128xi1>, vector<8x128xf32>
    %134 = arith.select %5, %31, %133 : vector<8x128xi1>, vector<8x128xf32>
    %c0_45 = arith.constant 0 : index
    %c0_46 = arith.constant 0 : index
    %135 = vector.load %arg5[%c0_45, %c0_46] : memref<8x128xf32, #tpu.memory_space<vmem>>, vector<8x128xf32>
    tpu.vector_store %arg5[%c0_45, %c0_46], %134 {strides = array<i32>} : memref<8x128xf32, #tpu.memory_space<vmem>>, vector<8x128xf32>,
    %136 = arith.cmpf ogt, %39, %31 : vector<8x128xf32>
    %137 = arith.select %136, %39, %31 : vector<8x128xi1>, vector<8x128xf32>
    %138 = arith.select %7, %31, %137 : vector<8x128xi1>, vector<8x128xf32>
    %139 = arith.select %5, %39, %138 : vector<8x128xi1>, vector<8x128xf32>
    %c0_47 = arith.constant 0 : index
    %c0_48 = arith.constant 0 : index
    %140 = vector.load %arg6[%c0_47, %c0_48] : memref<8x128xf32, #tpu.memory_space<vmem>>, vector<8x128xf32>
    tpu.vector_store %arg6[%c0_47, %c0_48], %139 {strides = array<i32>} : memref<8x128xf32, #tpu.memory_space<vmem>>, vector<8x128xf32>,
    %141 = arith.select %7, %87, %120 : vector<8x128xi1>, vector<8x128xf32>
    %142 = arith.select %5, %58, %141 : vector<8x128xi1>, vector<8x128xf32>
    %c0_49 = arith.constant 0 : index
    %c0_50 = arith.constant 0 : index
    %c0_51 = arith.constant 0 : index
    %143 = vector.load %arg7[%c0_49, %c0_50, %c0_51] : memref<2x8x128xf32, #tpu.memory_space<vmem>>, vector<1x8x128xf32>
    %144 = vector.shape_cast %143 : vector<1x8x128xf32> to vector<8x128xf32>
    %145 = vector.shape_cast %142 : vector<8x128xf32> to vector<1x8x128xf32>
    tpu.vector_store %arg7[%c0_49, %c0_50, %c0_51], %145 {strides = array<i32>} : memref<2x8x128xf32, #tpu.memory_space<vmem>>, vector<1x8x128xf32>,
    %146 = arith.select %7, %89, %131 : vector<8x128xi1>, vector<8x128xf32>
    %147 = arith.select %5, %79, %146 : vector<8x128xi1>, vector<8x128xf32>
    %c1 = arith.constant 1 : index
    %c0_52 = arith.constant 0 : index
    %c0_53 = arith.constant 0 : index
    %148 = vector.load %arg7[%c1, %c0_52, %c0_53] : memref<2x8x128xf32, #tpu.memory_space<vmem>>, vector<1x8x128xf32>
    %149 = vector.shape_cast %148 : vector<1x8x128xf32> to vector<8x128xf32>
    %150 = vector.shape_cast %147 : vector<8x128xf32> to vector<1x8x128xf32>
    tpu.vector_store %arg7[%c1, %c0_52, %c0_53], %150 {strides = array<i32>} : memref<2x8x128xf32, #tpu.memory_space<vmem>>, vector<1x8x128xf32>,
    %151 = arith.select %7, %44, %102 : vector<8x128xi1>, vector<8x128xf32>
    %152 = arith.select %5, %80, %151 : vector<8x128xi1>, vector<8x128xf32>
    %c0_54 = arith.constant 0 : index
    %c0_55 = arith.constant 0 : index
    %c0_56 = arith.constant 0 : index
    %153 = vector.load %arg8[%c0_54, %c0_55, %c0_56] : memref<2x8x128xf32, #tpu.memory_space<vmem>>, vector<1x8x128xf32>
    %154 = vector.shape_cast %153 : vector<1x8x128xf32> to vector<8x128xf32>
    %155 = vector.shape_cast %152 : vector<8x128xf32> to vector<1x8x128xf32>
    tpu.vector_store %arg8[%c0_54, %c0_55, %c0_56], %155 {strides = array<i32>} : memref<2x8x128xf32, #tpu.memory_space<vmem>>, vector<1x8x128xf32>,
    %156 = arith.select %7, %91, %103 : vector<8x128xi1>, vector<8x128xf32>
    %157 = arith.select %5, %82, %156 : vector<8x128xi1>, vector<8x128xf32>
    %c1_57 = arith.constant 1 : index
    %c0_58 = arith.constant 0 : index
    %c0_59 = arith.constant 0 : index
    %158 = vector.load %arg8[%c1_57, %c0_58, %c0_59] : memref<2x8x128xf32, #tpu.memory_space<vmem>>, vector<1x8x128xf32>
    %159 = vector.shape_cast %158 : vector<1x8x128xf32> to vector<8x128xf32>
    %160 = vector.shape_cast %157 : vector<8x128xf32> to vector<1x8x128xf32>
    tpu.vector_store %arg8[%c1_57, %c0_58, %c0_59], %160 {strides = array<i32>} : memref<2x8x128xf32, #tpu.memory_space<vmem>>, vector<1x8x128xf32>,
    return
  }
  func.func @transform_0(%arg0: i32) -> (i32, i32) {
    %c0_i32 = arith.constant 0 : i32
    %c0_i32_0 = arith.constant 0 : i32
    return %arg0, %c0_i32 : i32, i32
  }
  func.func @transform_1(%arg0: i32) -> (i32, i32) {
    %c0_i32 = arith.constant 0 : i32
    %c0_i32_0 = arith.constant 0 : i32
    return %arg0, %c0_i32 : i32, i32
  }
  func.func @transform_2(%arg0: i32) -> (i32, i32) {
    %c0_i32 = arith.constant 0 : i32
    %c0_i32_0 = arith.constant 0 : i32
    return %arg0, %c0_i32 : i32, i32
  }
  func.func @transform_3(%arg0: i32) -> (i32, i32) {
    %c0_i32 = arith.constant 0 : i32
    %c0_i32_0 = arith.constant 0 : i32
    return %arg0, %c0_i32 : i32, i32
  }
  func.func @transform_4(%arg0: i32) -> (i32, i32) {
    %c0_i32 = arith.constant 0 : i32
    %c0_i32_0 = arith.constant 0 : i32
    return %arg0, %c0_i32 : i32, i32
  }
  func.func @transform_5(%arg0: i32) -> (i32, i32) {
    %c0_i32 = arith.constant 0 : i32
    %c0_i32_0 = arith.constant 0 : i32
    return %arg0, %c0_i32 : i32, i32
  }
  func.func @transform_6(%arg0: i32) -> (i32, i32, i32) {
    %c0_i32 = arith.constant 0 : i32
    %c0_i32_0 = arith.constant 0 : i32
    %c0_i32_1 = arith.constant 0 : i32
    return %c0_i32, %arg0, %c0_i32_0 : i32, i32, i32
  }
  func.func @transform_7(%arg0: i32) -> (i32, i32, i32) {
    %c0_i32 = arith.constant 0 : i32
    %c0_i32_0 = arith.constant 0 : i32
    %c0_i32_1 = arith.constant 0 : i32
    return %c0_i32, %arg0, %c0_i32_0 : i32, i32, i32
  }
}

</mosaic_0001>

<llo_original>
// kernel: tpu_custom_call.1
$region0: #{tpu_custom_call.1}
  #allocation0 [shape = 'u32[]', space=smem, size = 0x4, offset = 0x4, fixed_abs, tag = 'smem constant byte address 0x4 - core index']
  #allocation1 [shape = 'u32[72,128]{1,0:T(1,128)}', space=vmem, size = 0x9000, scoped, tag = 'internal scratch']
  %s0 = inlined_call_operand.hbm [shape: f32[16,128], index: 0, kind: input, shape index: {}]
  %s1 = inlined_call_operand.hbm [shape: f32[16,128], index: 1, kind: input, shape index: {}]
  %s2 = inlined_call_operand.hbm [shape: f32[16,128], index: 2, kind: input, shape index: {}]
  %s3 = inlined_call_operand.hbm [shape: f32[16,128], index: 3, kind: input, shape index: {}]
  %s4 = inlined_call_operand.hbm [shape: f32[16,128], index: 4, kind: output, shape index: {0}]
  %s5 = inlined_call_operand.hbm [shape: f32[16,128], index: 5, kind: output, shape index: {1}]
  %s6 = inlined_call_operand.hbm [shape: f32[2,16,128], index: 6, kind: output, shape index: {2}]
  %s7 = inlined_call_operand.hbm [shape: f32[2,16,128], index: 7, kind: output, shape index: {3}]
  %8 = xla_tuple %s4, %s5, %s6, %s7
  %s9 = sld [smem:[#allocation0]]
  $region89: #{tpu_custom_call.1} parent=0
    _
  %s11 = ssub.s32 1, %s9
  %s12 = scalar_select 0, %s11, %s9
  $region1: #{tpu_custom_call.1} parent=0
    #allocation2 [shape = 'u8[8192]{0}', space=vmem, size = 0x2000, scoped, tag = 'input window, operand 0']
    #allocation3 [shape = 's32[2]{0}', space=sflag, size = 0x8, scoped, tag = 'scoped memory for tpu_custom_call.1']
    #allocation4 [shape = 's32[2]{0}', space=sflag, size = 0x8, scoped, tag = 'scoped memory for tpu_custom_call.1']
    #allocation5 [shape = 'u8[8192]{0}', space=vmem, size = 0x2000, scoped, tag = 'input window, operand 1']
    #allocation6 [shape = 's32[2]{0}', space=sflag, size = 0x8, scoped, tag = 'scoped memory for tpu_custom_call.1']
    #allocation7 [shape = 'u8[8192]{0}', space=vmem, size = 0x2000, scoped, tag = 'input window, operand 2']
    #allocation8 [shape = 'u8[8192]{0}', space=vmem, size = 0x2000, scoped, tag = 'input window, operand 3']
    #allocation9 [shape = 's32[2]{0}', space=sflag, size = 0x8, scoped, tag = 'scoped memory for tpu_custom_call.1']
    #allocation10 [shape = 'u8[8192]{0}', space=vmem, size = 0x2000, scoped, tag = 'output window, operand 0']
    #allocation11 [shape = 'u8[8192]{0}', space=vmem, size = 0x2000, scoped, tag = 'output window, operand 1']
    #allocation12 [shape = 's32[2]{0}', space=sflag, size = 0x8, scoped, tag = 'scoped memory for tpu_custom_call.1']
    #allocation13 [shape = 'u8[16384]{0}', space=vmem, size = 0x4000, scoped, tag = 'output window, operand 2']
    #allocation14 [shape = 'u8[16384]{0}', space=vmem, size = 0x4000, scoped, tag = 'output window, operand 3']
    #allocation15 [shape = 's32[2]{0}', space=sflag, size = 0x8, scoped, tag = 'scoped memory for tpu_custom_call.1']
    %13 = vsyncpa [#allocation3], 0
    %s14 = scalar_lea.sflag [#allocation3], 1
    %15 = vsyncpa %s14, 0
    %16 = vsyncpa [#allocation6], 0
    %s17 = scalar_lea.sflag [#allocation6], 1
    %18 = vsyncpa %s17, 0
    %19 = vsyncpa [#allocation9], 0
    %s20 = scalar_lea.sflag [#allocation9], 1
    %21 = vsyncpa %s20, 0
    %22 = vsyncpa [#allocation4], 0
    %s23 = scalar_lea.sflag [#allocation4], 1
    %24 = vsyncpa %s23, 0
    %25 = vsyncpa [#allocation12], 0
    %s26 = scalar_lea.sflag [#allocation12], 1
    %27 = vsyncpa %s26, 0
    %28 = vsyncpa [#allocation15], 0
    %s29 = scalar_lea.sflag [#allocation15], 1
    %30 = vsyncpa %s29, 0
    loop: start=0, step=1, limit=4
    $region2: #{tpu_custom_call.1} parent=1 // loop_pre_header
      _
    $region3: #{tpu_custom_call.1} parent=1 // loop_header
      %s32 = sphi 0, %s36
      %p33 = scmp.ge.s32.totalorder %s32, 4
      %s42 = sphi 0, %s44
      %s45 = sphi 0, %s42
      %s46 = sphi 0, %s45
      %s62 = sphi 0, %s46
      %s68 = sphi 0, %s70
      %s71 = sphi 0, %s68
      %s72 = sphi 0, %s71
      %s88 = sphi 0, %s72
      %s94 = sphi 0, %s96
      %s97 = sphi 0, %s94
      %s98 = sphi 0, %s97
      %s114 = sphi 0, %s98
      %s120 = sphi 0, %s122
      %s123 = sphi 0, %s120
      %s124 = sphi 0, %s123
      %s140 = sphi 0, %s124
      %s146 = sphi 0, %s148
      %s149 = sphi 0, %s146
      %s150 = sphi 0, %s149
      %s166 = sphi 0, %s150
      %s172 = sphi 0, %s174
      %s175 = sphi 0, %s172
      %s176 = sphi 0, %s175
      %s192 = sphi 0, %s176
      %s198 = sphi 0, %s200
      %s201 = sphi 0, %s198
      %s202 = sphi 0, %s201
      %s218 = sphi 0, %s202
      %s224 = sphi 0, %s226
      %s227 = sphi 0, %s224
      %s228 = sphi 0, %s227
      %s244 = sphi 0, %s228
    $region4: #{tpu_custom_call.1} parent=1 // loop_header_branch
      %35 = sbr.rel (%p33) target = $region8
    $region5: #{tpu_custom_call.1} parent=1 // loop_body
      %s37 = ssub.s32 %s32, 1
      %s38 = ssub.s32 %s32, 2
      %s39 = sadd.s32 %s32, 1
      %s40 = ssub.s32 %s32, %s39
      %p41 = scmp.eq.s32.totalorder %s40, 0
      %s43 = sadd.s32 %s42, 1
      %s44 = scalar_select %p41, %s42, %s43
      %p47 = pneg %p41
      %p48 = scmp.eq.s32.totalorder %s32, 1
      %p49 = por %p47, %p48
      %p50 = scmp.ne.s32.totalorder %s42, %s45
      %p51 = scmp.eq.s32.totalorder %s32, 0
      %p52 = por %p50, %p51
      %p53 = scmp.ne.s32.totalorder %s42, %s45
      %p54 = scmp.eq.s32.totalorder %s37, 1
      %p55 = por %p53, %p54
      %p56 = scmp.ne.s32.totalorder %s45, %s46
      %p57 = scmp.eq.s32.totalorder %s37, 0
      %p58 = por %p56, %p57
      %p59 = scmp.ne.s32.totalorder %s45, %s46
      %p60 = scmp.eq.s32.totalorder %s38, 1
      %p61 = por %p59, %p60
      %p63 = scmp.ne.s32.totalorder %s46, %s62
      %p64 = scmp.eq.s32.totalorder %s38, 0
      %p65 = por %p63, %p64
      %s66 = ssub.s32 %s32, %s39
      %p67 = scmp.eq.s32.totalorder %s66, 0
      %s69 = sadd.s32 %s68, 1
      %s70 = scalar_select %p67, %s68, %s69
      %p73 = pneg %p67
      %p74 = scmp.eq.s32.totalorder %s32, 1
      %p75 = por %p73, %p74
      %p76 = scmp.ne.s32.totalorder %s68, %s71
      %p77 = scmp.eq.s32.totalorder %s32, 0
      %p78 = por %p76, %p77
      %p79 = scmp.ne.s32.totalorder %s68, %s71
      %p80 = scmp.eq.s32.totalorder %s37, 1
      %p81 = por %p79, %p80
      %p82 = scmp.ne.s32.totalorder %s71, %s72
      %p83 = scmp.eq.s32.totalorder %s37, 0
      %p84 = por %p82, %p83
      %p85 = scmp.ne.s32.totalorder %s71, %s72
      %p86 = scmp.eq.s32.totalorder %s38, 1
      %p87 = por %p85, %p86
      %p89 = scmp.ne.s32.totalorder %s72, %s88
      %p90 = scmp.eq.s32.totalorder %s38, 0
      %p91 = por %p89, %p90
      %s92 = ssub.s32 %s32, %s39
      %p93 = scmp.eq.s32.totalorder %s92, 0
      %s95 = sadd.s32 %s94, 1
      %s96 = scalar_select %p93, %s94, %s95
      %p99 = pneg %p93
      %p100 = scmp.eq.s32.totalorder %s32, 1
      %p101 = por %p99, %p100
      %p102 = scmp.ne.s32.totalorder %s94, %s97
      %p103 = scmp.eq.s32.totalorder %s32, 0
      %p104 = por %p102, %p103
      %p105 = scmp.ne.s32.totalorder %s94, %s97
      %p106 = scmp.eq.s32.totalorder %s37, 1
      %p107 = por %p105, %p106
      %p108 = scmp.ne.s32.totalorder %s97, %s98
      %p109 = scmp.eq.s32.totalorder %s37, 0
      %p110 = por %p108, %p109
      %p111 = scmp.ne.s32.totalorder %s97, %s98
      %p112 = scmp.eq.s32.totalorder %s38, 1
      %p113 = por %p111, %p112
      %p115 = scmp.ne.s32.totalorder %s98, %s114
      %p116 = scmp.eq.s32.totalorder %s38, 0
      %p117 = por %p115, %p116
      %s118 = ssub.s32 %s32, %s39
      %p119 = scmp.eq.s32.totalorder %s118, 0
      %s121 = sadd.s32 %s120, 1
      %s122 = scalar_select %p119, %s120, %s121
      %p125 = pneg %p119
      %p126 = scmp.eq.s32.totalorder %s32, 1
      %p127 = por %p125, %p126
      %p128 = scmp.ne.s32.totalorder %s120, %s123
      %p129 = scmp.eq.s32.totalorder %s32, 0
      %p130 = por %p128, %p129
      %p131 = scmp.ne.s32.totalorder %s120, %s123
      %p132 = scmp.eq.s32.totalorder %s37, 1
      %p133 = por %p131, %p132
      %p134 = scmp.ne.s32.totalorder %s123, %s124
      %p135 = scmp.eq.s32.totalorder %s37, 0
      %p136 = por %p134, %p135
      %p137 = scmp.ne.s32.totalorder %s123, %s124
      %p138 = scmp.eq.s32.totalorder %s38, 1
      %p139 = por %p137, %p138
      %p141 = scmp.ne.s32.totalorder %s124, %s140
      %p142 = scmp.eq.s32.totalorder %s38, 0
      %p143 = por %p141, %p142
      %s144 = ssub.s32 %s32, %s39
      %p145 = scmp.eq.s32.totalorder %s144, 0
      %s147 = sadd.s32 %s146, 1
      %s148 = scalar_select %p145, %s146, %s147
      %p151 = pneg %p145
      %p152 = scmp.eq.s32.totalorder %s32, 1
      %p153 = por %p151, %p152
      %p154 = scmp.ne.s32.totalorder %s146, %s149
      %p155 = scmp.eq.s32.totalorder %s32, 0
      %p156 = por %p154, %p155
      %p157 = scmp.ne.s32.totalorder %s146, %s149
      %p158 = scmp.eq.s32.totalorder %s37, 1
      %p159 = por %p157, %p158
      %p160 = scmp.ne.s32.totalorder %s149, %s150
      %p161 = scmp.eq.s32.totalorder %s37, 0
      %p162 = por %p160, %p161
      %p163 = scmp.ne.s32.totalorder %s149, %s150
      %p164 = scmp.eq.s32.totalorder %s38, 1
      %p165 = por %p163, %p164
      %p167 = scmp.ne.s32.totalorder %s150, %s166
      %p168 = scmp.eq.s32.totalorder %s38, 0
      %p169 = por %p167, %p168
      %s170 = ssub.s32 %s32, %s39
      %p171 = scmp.eq.s32.totalorder %s170, 0
      %s173 = sadd.s32 %s172, 1
      %s174 = scalar_select %p171, %s172, %s173
      %p177 = pneg %p171
      %p178 = scmp.eq.s32.totalorder %s32, 1
      %p179 = por %p177, %p178
      %p180 = scmp.ne.s32.totalorder %s172, %s175
      %p181 = scmp.eq.s32.totalorder %s32, 0
      %p182 = por %p180, %p181
      %p183 = scmp.ne.s32.totalorder %s172, %s175
      %p184 = scmp.eq.s32.totalorder %s37, 1
      %p185 = por %p183, %p184
      %p186 = scmp.ne.s32.totalorder %s175, %s176
      %p187 = scmp.eq.s32.totalorder %s37, 0
      %p188 = por %p186, %p187
      %p189 = scmp.ne.s32.totalorder %s175, %s176
      %p190 = scmp.eq.s32.totalorder %s38, 1
      %p191 = por %p189, %p190
      %p193 = scmp.ne.s32.totalorder %s176, %s192
      %p194 = scmp.eq.s32.totalorder %s38, 0
      %p195 = por %p193, %p194
      %s196 = ssub.s32 %s32, %s39
      %p197 = scmp.eq.s32.totalorder %s196, 0
      %s199 = sadd.s32 %s198, 1
      %s200 = scalar_select %p197, %s198, %s199
      %p203 = pneg %p197
      %p204 = scmp.eq.s32.totalorder %s32, 1
      %p205 = por %p203, %p204
      %p206 = scmp.ne.s32.totalorder %s198, %s201
      %p207 = scmp.eq.s32.totalorder %s32, 0
      %p208 = por %p206, %p207
      %p209 = scmp.ne.s32.totalorder %s198, %s201
      %p210 = scmp.eq.s32.totalorder %s37, 1
      %p211 = por %p209, %p210
      %p212 = scmp.ne.s32.totalorder %s201, %s202
      %p213 = scmp.eq.s32.totalorder %s37, 0
      %p214 = por %p212, %p213
      %p215 = scmp.ne.s32.totalorder %s201, %s202
      %p216 = scmp.eq.s32.totalorder %s38, 1
      %p217 = por %p215, %p216
      %p219 = scmp.ne.s32.totalorder %s202, %s218
      %p220 = scmp.eq.s32.totalorder %s38, 0
      %p221 = por %p219, %p220
      %s222 = ssub.s32 %s32, %s39
      %p223 = scmp.eq.s32.totalorder %s222, 0
      %s225 = sadd.s32 %s224, 1
      %s226 = scalar_select %p223, %s224, %s225
      %p229 = pneg %p223
      %p230 = scmp.eq.s32.totalorder %s32, 1
      %p231 = por %p229, %p230
      %p232 = scmp.ne.s32.totalorder %s224, %s227
      %p233 = scmp.eq.s32.totalorder %s32, 0
      %p234 = por %p232, %p233
      %p235 = scmp.ne.s32.totalorder %s224, %s227
      %p236 = scmp.eq.s32.totalorder %s37, 1
      %p237 = por %p235, %p236
      %p238 = scmp.ne.s32.totalorder %s227, %s228
      %p239 = scmp.eq.s32.totalorder %s37, 0
      %p240 = por %p238, %p239
      %p241 = scmp.ne.s32.totalorder %s227, %s228
      %p242 = scmp.eq.s32.totalorder %s38, 1
      %p243 = por %p241, %p242
      %p245 = scmp.ne.s32.totalorder %s228, %s244
      %p246 = scmp.eq.s32.totalorder %s38, 0
      %p247 = por %p245, %p246
      %p248 = scmp.le.s32.totalorder 1, %s32
      %p249 = scmp.lt.s32.totalorder %s32, 3
      %p250 = pnand %p248, %p249
      %p251 = pneg %p250
      // Predicated region
      $region9: #{tpu_custom_call.1} parent=5 // pred_check
        _
      $region10: #{tpu_custom_call.1} parent=5 // pred_check_branch
        %253 = sbr.rel (%p250) target = $region12
      $region11: #{tpu_custom_call.1} parent=5 // pred_region
        %s254 = ssub.s32 %s32, 1
      $region12: #{tpu_custom_call.1} parent=5 // pred_fallthru
        _
      %p255 = scmp.lt.s32.totalorder %s32, 2
      // Predicated region
      $region13: #{tpu_custom_call.1} parent=5 // pred_check
        %p256 = pneg %p255
      $region14: #{tpu_custom_call.1} parent=5 // pred_check_branch
        %258 = sbr.rel (%p256) target = $region16
      $region15: #{tpu_custom_call.1} parent=5 // pred_region
        // Predicated region
        $region17: #{tpu_custom_call.1} parent=15 // pred_check
          %p259 = pneg %p52
        $region18: #{tpu_custom_call.1} parent=15 // pred_check_branch
          %261 = sbr.rel (%p259) target = $region20
        $region19: #{tpu_custom_call.1} parent=15 // pred_region
          %s262 = sand.u32 %s42, 1
          %s263 = scalar_lea.sflag [#allocation3], %s262
          %s264 = sand.u32 %s42, 1
          %s265 = smul.addr %s264, 8
          %s266 = scalar_lea.vmem [#allocation2], %s265
          %268 = vsyncadd %s263, 0
          %s269 = smul.addr %s32, 8
          %s270 = scalar_lea.hbm %s0, %s269
          %s272 = sshll.u32 %s270, 4
          %s273 = int_to_ptr.hbm [resolvable:$true] %s272
          %s274 = sshll.u32 %s266, 4
          %s275 = int_to_ptr.vmem [resolvable:$true] %s274
          %277 = dma.hbm_to_vmem [thread:$0]  %s273, 128, %s275, %s263
        $region20: #{tpu_custom_call.1} parent=15 // pred_fallthru
          _
        // Predicated region
        $region21: #{tpu_custom_call.1} parent=15 // pred_check
          %p278 = pneg %p78
        $region22: #{tpu_custom_call.1} parent=15 // pred_check_branch
          %280 = sbr.rel (%p278) target = $region24
        $region23: #{tpu_custom_call.1} parent=15 // pred_region
          %s281 = sand.u32 %s32, 1
          %s282 = scalar_lea.sflag [#allocation6], %s281
          %s283 = sand.u32 %s68, 1
          %s284 = smul.addr %s283, 8
          %s285 = scalar_lea.vmem [#allocation5], %s284
          %287 = vsyncadd %s282, 0
          %s288 = smul.addr %s32, 8
          %s289 = scalar_lea.hbm %s1, %s288
          %s291 = sshll.u32 %s289, 4
          %s292 = int_to_ptr.hbm [resolvable:$true] %s291
          %s293 = sshll.u32 %s285, 4
          %s294 = int_to_ptr.vmem [resolvable:$true] %s293
          %296 = dma.hbm_to_vmem [thread:$0]  %s292, 128, %s294, %s282
        $region24: #{tpu_custom_call.1} parent=15 // pred_fallthru
          _
        // Predicated region
        $region25: #{tpu_custom_call.1} parent=15 // pred_check
          %p297 = pneg %p104
        $region26: #{tpu_custom_call.1} parent=15 // pred_check_branch
          %299 = sbr.rel (%p297) target = $region28
        $region27: #{tpu_custom_call.1} parent=15 // pred_region
          %s300 = sand.u32 %s32, 1
          %s301 = scalar_lea.sflag [#allocation6], %s300
          %s302 = sand.u32 %s94, 1
          %s303 = smul.addr %s302, 8
          %s304 = scalar_lea.vmem [#allocation7], %s303
          %306 = vsyncadd %s301, 0
          %s307 = smul.addr %s32, 8
          %s308 = scalar_lea.hbm %s2, %s307
          %s310 = sshll.u32 %s308, 4
          %s311 = int_to_ptr.hbm [resolvable:$true] %s310
          %s312 = sshll.u32 %s304, 4
          %s313 = int_to_ptr.vmem [resolvable:$true] %s312
          %315 = dma.hbm_to_vmem [thread:$0]  %s311, 128, %s313, %s301
        $region28: #{tpu_custom_call.1} parent=15 // pred_fallthru
          _
        // Predicated region
        $region29: #{tpu_custom_call.1} parent=15 // pred_check
          %p316 = pneg %p130
        $region30: #{tpu_custom_call.1} parent=15 // pred_check_branch
          %318 = sbr.rel (%p316) target = $region32
        $region31: #{tpu_custom_call.1} parent=15 // pred_region
          %s319 = sand.u32 %s120, 1
          %s320 = scalar_lea.sflag [#allocation9], %s319
          %s321 = sand.u32 %s120, 1
          %s322 = smul.addr %s321, 8
          %s323 = scalar_lea.vmem [#allocation8], %s322
          %325 = vsyncadd %s320, 0
          %s326 = smul.addr %s32, 8
          %s327 = scalar_lea.hbm %s3, %s326
          %s329 = sshll.u32 %s327, 4
          %s330 = int_to_ptr.hbm [resolvable:$true] %s329
          %s331 = sshll.u32 %s323, 4
          %s332 = int_to_ptr.vmem [resolvable:$true] %s331
          %334 = dma.hbm_to_vmem [thread:$0]  %s330, 128, %s332, %s320
        $region32: #{tpu_custom_call.1} parent=15 // pred_fallthru
          _
      $region16: #{tpu_custom_call.1} parent=5 // pred_fallthru
        _
      %p335 = scmp.le.s32.totalorder 1, %s32
      %p336 = scmp.lt.s32.totalorder %s32, 3
      %p337 = pnand %p335, %p336
      %p338 = pneg %p337
      // Predicated region
      $region33: #{tpu_custom_call.1} parent=5 // pred_check
        _
      $region34: #{tpu_custom_call.1} parent=5 // pred_check_branch
        %340 = sbr.rel (%p337) target = $region36
      $region35: #{tpu_custom_call.1} parent=5 // pred_region
        %s341 = ssub.s32 %s32, 1
        %s342 = sand.u32 %s45, 1
        %s343 = scalar_lea.sflag [#allocation3], %s342
        %s344 = sand.u32 %s45, 1
        %s345 = smul.addr %s344, 8
        %s346 = scalar_lea.vmem [#allocation2], %s345
        // Predicated region
        $region37: #{tpu_custom_call.1} parent=35 // pred_check
          %p347 = pneg %p58
        $region38: #{tpu_custom_call.1} parent=35 // pred_check_branch
          %349 = sbr.rel (%p347) target = $region40
        $region39: #{tpu_custom_call.1} parent=35 // pred_region
          %351 = dma.done %s343, 128
        $region40: #{tpu_custom_call.1} parent=35 // pred_fallthru
          _
        %s352 = sand.u32 %s37, 1
        %s353 = scalar_lea.sflag [#allocation6], %s352
        %s354 = sand.u32 %s71, 1
        %s355 = smul.addr %s354, 8
        %s356 = scalar_lea.vmem [#allocation5], %s355
        // Predicated region
        $region41: #{tpu_custom_call.1} parent=35 // pred_check
          %p357 = pneg %p84
        $region42: #{tpu_custom_call.1} parent=35 // pred_check_branch
          %359 = sbr.rel (%p357) target = $region44
        $region43: #{tpu_custom_call.1} parent=35 // pred_region
          %361 = dma.done %s353, 128
        $region44: #{tpu_custom_call.1} parent=35 // pred_fallthru
          _
        %s362 = sand.u32 %s37, 1
        %s363 = scalar_lea.sflag [#allocation6], %s362
        %s364 = sand.u32 %s97, 1
        %s365 = smul.addr %s364, 8
        %s366 = scalar_lea.vmem [#allocation7], %s365
        // Predicated region
        $region45: #{tpu_custom_call.1} parent=35 // pred_check
          %p367 = pneg %p110
        $region46: #{tpu_custom_call.1} parent=35 // pred_check_branch
          %369 = sbr.rel (%p367) target = $region48
        $region47: #{tpu_custom_call.1} parent=35 // pred_region
          %371 = dma.done %s363, 128
        $region48: #{tpu_custom_call.1} parent=35 // pred_fallthru
          _
        %s372 = sand.u32 %s123, 1
        %s373 = scalar_lea.sflag [#allocation9], %s372
        %s374 = sand.u32 %s123, 1
        %s375 = smul.addr %s374, 8
        %s376 = scalar_lea.vmem [#allocation8], %s375
        // Predicated region
        $region49: #{tpu_custom_call.1} parent=35 // pred_check
          %p377 = pneg %p136
        $region50: #{tpu_custom_call.1} parent=35 // pred_check_branch
          %379 = sbr.rel (%p377) target = $region52
        $region51: #{tpu_custom_call.1} parent=35 // pred_region
          %381 = dma.done %s373, 128
        $region52: #{tpu_custom_call.1} parent=35 // pred_fallthru
          _
        %s382 = sand.u32 %s45, 1
        %s383 = scalar_lea.sflag [#allocation3], %s382
        %s384 = sand.u32 %s45, 1
        %s385 = smul.addr %s384, 8
        %s386 = scalar_lea.vmem [#allocation2], %s385
        %p387 = pneg %p58
        %p388 = pneg %p55
        %s389 = sand.u32 %s37, 1
        %s390 = scalar_lea.sflag [#allocation6], %s389
        %s391 = sand.u32 %s71, 1
        %s392 = smul.addr %s391, 8
        %s393 = scalar_lea.vmem [#allocation5], %s392
        %p394 = pneg %p84
        %p395 = pneg %p81
        %s396 = sand.u32 %s37, 1
        %s397 = scalar_lea.sflag [#allocation6], %s396
        %s398 = sand.u32 %s97, 1
        %s399 = smul.addr %s398, 8
        %s400 = scalar_lea.vmem [#allocation7], %s399
        %p401 = pneg %p110
        %p402 = pneg %p107
        %s403 = sand.u32 %s123, 1
        %s404 = scalar_lea.sflag [#allocation9], %s403
        %s405 = sand.u32 %s123, 1
        %s406 = smul.addr %s405, 8
        %s407 = scalar_lea.vmem [#allocation8], %s406
        %p408 = pneg %p136
        %p409 = pneg %p133
        %p410 = pneg %p162
        %p411 = pneg %p159
        %s412 = sand.u32 %s149, 1
        %s413 = scalar_lea.sflag [#allocation4], %s412
        %s414 = sand.u32 %s149, 1
        %s415 = smul.addr %s414, 8
        %s416 = scalar_lea.vmem [#allocation10], %s415
        %p417 = pneg %p188
        %p418 = pneg %p185
        %s419 = sand.u32 %s37, 1
        %s420 = scalar_lea.sflag [#allocation12], %s419
        %s421 = sand.u32 %s175, 1
        %s422 = smul.addr %s421, 8
        %s423 = scalar_lea.vmem [#allocation11], %s422
        %p424 = pneg %p214
        %p425 = pneg %p211
        %s426 = sand.u32 %s37, 1
        %s427 = scalar_lea.sflag [#allocation12], %s426
        %s428 = sand.u32 %s201, 1
        %s429 = smul.addr %s428, 16
        %s430 = scalar_lea.vmem [#allocation13], %s429
        %p431 = pneg %p240
        %p432 = pneg %p237
        %s433 = sand.u32 %s227, 1
        %s434 = scalar_lea.sflag [#allocation15], %s433
        %s435 = sand.u32 %s227, 1
        %s436 = smul.addr %s435, 16
        %s437 = scalar_lea.vmem [#allocation14], %s436
        %v438 = vld [vmem:[%s346] sm:$0xff]
        %v439 = vld [vmem:[%s356] sm:$0xff]
        %v440 = vld [vmem:[%s366] sm:$0xff]
        %v441 = vld [vmem:[%s376] sm:$0xff]
        %vm442 = vcmp.ge.f32.partialorder %v438, 0.0
        %vm443 = vcmp.le.f32.partialorder %v439, 0.0
        %vm444 = vmor %vm442, %vm443
        %vm445 = vmxor %vm444, 1
        %v446 = vsub.f32 0.0, %v438
        %v447 = vxor.u32 %v446, 2147483648
        %v448 = vmul.f32 %v447, 1.442695
        %v449 = vpow.pop %v448
        %v450 = vadd.f32 %v449, 1.0
        %v451 = vrcp.pop %v450
        %v452 = vmul.f32 %v450, %v451
        %v453 = vsub.f32 1.0, %v452
        %v454 = vmul.f32 %v451, %v453
        %v455 = vadd.f32 %v451, %v454
        %vm456 = vweird.f32 %v450
        %vm457 = vweird.f32 %v451
        %vm458 = vmor %vm456, %vm457
        %v459 = vsel %vm458, %v451, %v455
        %v460 = vand.u32 2147483647, %v450
        %vm461 = vcmp.eq.f32.partialorder %v460, 8.507059e+37
        %v462 = vand.u32 %v450, 2147483648
        %v463 = vor.u32 1.1754944e-38, %v462
        %v464 = vsel %vm461, %v463, %v459
        %v465 = vmul.f32 1.0, %v464
        %v466 = vsub.f32 0.0, %v439
        %v467 = vxor.u32 %v466, 2147483648
        %v468 = vmul.f32 %v467, 1.442695
        %v469 = vpow.pop %v468
        %v470 = vadd.f32 %v469, 1.0
        %v471 = vrcp.pop %v470
        %v472 = vmul.f32 %v470, %v471
        %v473 = vsub.f32 1.0, %v472
        %v474 = vmul.f32 %v471, %v473
        %v475 = vadd.f32 %v471, %v474
        %vm476 = vweird.f32 %v470
        %vm477 = vweird.f32 %v471
        %vm478 = vmor %vm476, %vm477
        %v479 = vsel %vm478, %v471, %v475
        %v480 = vand.u32 2147483647, %v470
        %vm481 = vcmp.eq.f32.partialorder %v480, 8.507059e+37
        %v482 = vand.u32 %v470, 2147483648
        %v483 = vor.u32 1.1754944e-38, %v482
        %v484 = vsel %vm481, %v483, %v479
        %v485 = vmul.f32 1.0, %v484
        %vm486 = vcmp.gt.f32.partialorder %v438, 0.0
        %v487 = vmul.f32 %v438, %v438
        %v488 = vsub.f32 %v487, 0.5
        %v489 = vsub.f32 %v465, 1.0
        %v490 = vsel %vm486, %v488, %v489
        %vm491 = vcmp.gt.f32.partialorder %v439, 0.0
        %v492 = vmul.f32 %v439, %v439
        %v493 = vsub.f32 %v492, 0.5
        %v494 = vsub.f32 %v485, 1.0
        %v495 = vsel %vm491, %v493, %v494
        %v496 = vsub.f32 1.0, %v465
        %v497 = vsub.f32 0.0, %v496
        %v498 = vmul.f32 %v497, %v465
        %v499 = vmul.f32 %v438, 2.0
        %v500 = vsub.f32 0.0, %v440
        %v501 = vxor.u32 %v500, 2147483648
        %v502 = vmul.f32 %v501, 1.442695
        %v503 = vpow.pop %v502
        %v504 = vadd.f32 %v503, 1.0
        %v505 = vrcp.pop %v504
        %v506 = vmul.f32 %v504, %v505
        %v507 = vsub.f32 1.0, %v506
        %v508 = vmul.f32 %v505, %v507
        %v509 = vadd.f32 %v505, %v508
        %vm510 = vweird.f32 %v504
        %vm511 = vweird.f32 %v505
        %vm512 = vmor %vm510, %vm511
        %v513 = vsel %vm512, %v505, %v509
        %v514 = vand.u32 2147483647, %v504
        %vm515 = vcmp.eq.f32.partialorder %v514, 8.507059e+37
        %v516 = vand.u32 %v504, 2147483648
        %v517 = vor.u32 1.1754944e-38, %v516
        %v518 = vsel %vm515, %v517, %v513
        %v519 = vmul.f32 1.0, %v518
        %v520 = vmul.f32 %v519, 2.0
        %v521 = vsub.f32 %v439, %v438
        %v522 = vmul.f32 %v520, %v521
        %v523 = vadd.f32 %v499, %v522
        %v524 = vmul.f32 %v523, 0.5
        %vm525 = vcmp.gt.f32.partialorder %v524, 0.0
        %v526 = vmul.f32 %v524, %v524
        %v527 = vsub.f32 %v526, 0.5
        %v528 = vsub.f32 0.0, %v524
        %v529 = vxor.u32 %v528, 2147483648
        %v530 = vmul.f32 %v529, 1.442695
        %v531 = vpow.pop %v530
        %v532 = vadd.f32 %v531, 1.0
        %v533 = vrcp.pop %v532
        %v534 = vmul.f32 %v532, %v533
        %v535 = vsub.f32 1.0, %v534
        %v536 = vmul.f32 %v533, %v535
        %v537 = vadd.f32 %v533, %v536
        %vm538 = vweird.f32 %v532
        %vm539 = vweird.f32 %v533
        %vm540 = vmor %vm538, %vm539
        %v541 = vsel %vm540, %v533, %v537
        %v542 = vand.u32 2147483647, %v532
        %vm543 = vcmp.eq.f32.partialorder %v542, 8.507059e+37
        %v544 = vand.u32 %v532, 2147483648
        %v545 = vor.u32 1.1754944e-38, %v544
        %v546 = vsel %vm543, %v545, %v541
        %v547 = vmul.f32 1.0, %v546
        %v548 = vsub.f32 %v547, 1.0
        %v549 = vsel %vm525, %v527, %v548
        %v550 = vmul.f32 %v523, %v523
        %v551 = vmul.f32 %v550, 0.5
        %v552 = vsub.f32 %v549, %v551
        %v553 = vadd.f32 %v439, %v438
        %v554 = vmul.f32 %v553, %v438
        %v555 = vsub.f32 %v490, %v554
        %v556 = vsub.f32 %v438, %v439
        %v557 = vsel %vm443, %v556, 1.0
        %v558 = vsub.f32 %v490, %v495
        %v559 = vrcp.pop %v557
        %v560 = vmul.f32 %v557, %v559
        %v561 = vsub.f32 1.0, %v560
        %v562 = vmul.f32 %v559, %v561
        %v563 = vadd.f32 %v559, %v562
        %vm564 = vweird.f32 %v557
        %vm565 = vweird.f32 %v559
        %vm566 = vmor %vm564, %vm565
        %v567 = vsel %vm566, %v559, %v563
        %v568 = vand.u32 2147483647, %v557
        %vm569 = vcmp.eq.f32.partialorder %v568, 8.507059e+37
        %v570 = vand.u32 %v557, 2147483648
        %v571 = vor.u32 1.1754944e-38, %v570
        %v572 = vsel %vm569, %v571, %v567
        %v573 = vmul.f32 %v558, %v572
        %v574 = vmul.f32 %v573, %v438
        %v575 = vsub.f32 %v490, %v574
        %v576 = vmul.f32 %v498, %v438
        %v577 = vsub.f32 %v490, %v576
        %v578 = vsel %vm445, %v521, 1.0
        %v579 = vsub.f32 %v495, %v490
        %v580 = vrcp.pop %v578
        %v581 = vmul.f32 %v578, %v580
        %v582 = vsub.f32 1.0, %v581
        %v583 = vmul.f32 %v580, %v582
        %v584 = vadd.f32 %v580, %v583
        %vm585 = vweird.f32 %v578
        %vm586 = vweird.f32 %v580
        %vm587 = vmor %vm585, %vm586
        %v588 = vsel %vm587, %v580, %v584
        %v589 = vand.u32 2147483647, %v578
        %vm590 = vcmp.eq.f32.partialorder %v589, 8.507059e+37
        %v591 = vand.u32 %v578, 2147483648
        %v592 = vor.u32 1.1754944e-38, %v591
        %v593 = vsel %vm590, %v592, %v588
        %v594 = vmul.f32 %v579, %v593
        %v595 = vmul.f32 %v594, %v439
        %v596 = vsub.f32 %v495, %v595
        %vm597 = vcmp.lt.f32.partialorder %v498, %v594
        %v598 = vsel %vm597, %v594, %v498
        %v599 = vsel %vm597, %v596, %v577
        %v600 = vsel %vm445, %v438, 1.0
        %v601 = vadd.f32 %v490, 0.5
        %v602 = vrcp.pop %v600
        %v603 = vmul.f32 %v600, %v602
        %v604 = vsub.f32 1.0, %v603
        %v605 = vmul.f32 %v602, %v604
        %v606 = vadd.f32 %v602, %v605
        %vm607 = vweird.f32 %v600
        %vm608 = vweird.f32 %v602
        %vm609 = vmor %vm607, %vm608
        %v610 = vsel %vm609, %v602, %v606
        %v611 = vand.u32 2147483647, %v600
        %vm612 = vcmp.eq.f32.partialorder %v611, 8.507059e+37
        %v613 = vand.u32 %v600, 2147483648
        %v614 = vor.u32 1.1754944e-38, %v613
        %v615 = vsel %vm612, %v614, %v610
        %v616 = vmul.f32 %v601, %v615
        %v617 = vmul.f32 %v439, 2.0
        %v618 = vsub.f32 0.0, %v441
        %v619 = vxor.u32 %v618, 2147483648
        %v620 = vmul.f32 %v619, 1.442695
        %v621 = vpow.pop %v620
        %v622 = vadd.f32 %v621, 1.0
        %v623 = vrcp.pop %v622
        %v624 = vmul.f32 %v622, %v623
        %v625 = vsub.f32 1.0, %v624
        %v626 = vmul.f32 %v623, %v625
        %v627 = vadd.f32 %v623, %v626
        %vm628 = vweird.f32 %v622
        %vm629 = vweird.f32 %v623
        %vm630 = vmor %vm628, %vm629
        %v631 = vsel %vm630, %v623, %v627
        %v632 = vand.u32 2147483647, %v622
        %vm633 = vcmp.eq.f32.partialorder %v632, 8.507059e+37
        %v634 = vand.u32 %v622, 2147483648
        %v635 = vor.u32 1.1754944e-38, %v634
        %v636 = vsel %vm633, %v635, %v631
        %v637 = vmul.f32 1.0, %v636
        %v638 = vsub.f32 %v617, %v616
        %v639 = vmul.f32 %v637, %v638
        %v640 = vadd.f32 %v616, %v639
        %vm641 = vcmp.gt.f32.partialorder %v640, 0.0
        %v642 = vsub.f32 0.0, %v640
        %v643 = vmul.f32 %v642, %v640
        %v644 = vmul.f32 %v643, 0.25
        %v645 = vsub.f32 %v644, 0.5
        %v646 = vsel %vm641, %v645, -0.5
        %v647 = vsel %vm443, %v495, -0.5
        %v648 = vsel %vm442, %v490, %v647
        %649 = vst [vmem:[%s416] sm:$0xff] %v648
        %vm650 = vcmp.gt.f32.partialorder %v495, %v490
        %v651 = vsel %vm650, %v495, %v490
        %v652 = vsel %vm443, %v490, %v651
        %v653 = vsel %vm442, %v495, %v652
        %654 = vst [vmem:[%s423] sm:$0xff] %v653
        %v655 = vsel %vm443, %v573, %v640
        %v656 = vsel %vm442, %v523, %v655
        %657 = vst [vmem:[%s430] sm:$0xff] %v656
        %v658 = vsel %vm443, %v575, %v646
        %v659 = vsel %vm442, %v552, %v658
        %s660 = scalar_lea.vmem %s430, 8 [#allocation13]
        %661 = vst [vmem:[%s660] sm:$0xff] %v659
        %v662 = vsel %vm443, %v498, %v598
        %v663 = vsel %vm442, %v553, %v662
        %664 = vst [vmem:[%s437] sm:$0xff] %v663
        %v665 = vsel %vm443, %v577, %v599
        %v666 = vsel %vm442, %v555, %v665
        %s667 = scalar_lea.vmem %s437, 8 [#allocation14]
        %668 = vst [vmem:[%s667] sm:$0xff] %v666
        %s669 = sand.u32 %s149, 1
        %s670 = scalar_lea.sflag [#allocation4], %s669
        %s671 = sand.u32 %s149, 1
        %s672 = smul.addr %s671, 8
        %s673 = scalar_lea.vmem [#allocation10], %s672
        %s674 = sand.u32 %s37, 1
        %s675 = scalar_lea.sflag [#allocation12], %s674
        %s676 = sand.u32 %s175, 1
        %s677 = smul.addr %s676, 8
        %s678 = scalar_lea.vmem [#allocation11], %s677
        %s679 = sand.u32 %s37, 1
        %s680 = scalar_lea.sflag [#allocation12], %s679
        %s681 = sand.u32 %s201, 1
        %s682 = smul.addr %s681, 16
        %s683 = scalar_lea.vmem [#allocation13], %s682
        %s684 = sand.u32 %s227, 1
        %s685 = scalar_lea.sflag [#allocation15], %s684
        %s686 = sand.u32 %s227, 1
        %s687 = smul.addr %s686, 16
        %s688 = scalar_lea.vmem [#allocation14], %s687
        // Predicated region
        $region53: #{tpu_custom_call.1} parent=35 // pred_check
          %p689 = pneg %p159
        $region54: #{tpu_custom_call.1} parent=35 // pred_check_branch
          %691 = sbr.rel (%p689) target = $region56
        $region55: #{tpu_custom_call.1} parent=35 // pred_region
          %693 = vsyncadd %s670, 0
          %s694 = smul.addr %s37, 8
          %s695 = scalar_lea.hbm %s4, %s694
          %s697 = sshll.u32 %s673, 4
          %s698 = int_to_ptr.vmem [resolvable:$true] %s697
          %s699 = sshll.u32 %s695, 4
          %s700 = int_to_ptr.hbm [resolvable:$true] %s699
          %702 = dma.vmem_to_hbm [thread:$0]  %s698, 128, %s700, %s670
        $region56: #{tpu_custom_call.1} parent=35 // pred_fallthru
          _
        // Predicated region
        $region57: #{tpu_custom_call.1} parent=35 // pred_check
          %p703 = pneg %p185
        $region58: #{tpu_custom_call.1} parent=35 // pred_check_branch
          %705 = sbr.rel (%p703) target = $region60
        $region59: #{tpu_custom_call.1} parent=35 // pred_region
          %707 = vsyncadd %s675, 0
          %s708 = smul.addr %s37, 8
          %s709 = scalar_lea.hbm %s5, %s708
          %s711 = sshll.u32 %s678, 4
          %s712 = int_to_ptr.vmem [resolvable:$true] %s711
          %s713 = sshll.u32 %s709, 4
          %s714 = int_to_ptr.hbm [resolvable:$true] %s713
          %716 = dma.vmem_to_hbm [thread:$0]  %s712, 128, %s714, %s675
        $region60: #{tpu_custom_call.1} parent=35 // pred_fallthru
          _
        // Predicated region
        $region61: #{tpu_custom_call.1} parent=35 // pred_check
          %p717 = pneg %p211
        $region62: #{tpu_custom_call.1} parent=35 // pred_check_branch
          %719 = sbr.rel (%p717) target = $region64
        $region63: #{tpu_custom_call.1} parent=35 // pred_region
          %721 = vsyncadd %s680, 0
          %s722 = smul.addr %s37, 8
          %s723 = scalar_lea.hbm %s6, %s722
          %s724 = sshll.u32 %s683, 4
          %s725 = int_to_ptr.vmem [resolvable:$true] %s724
          %s726 = sshll.u32 %s723, 4
          %s727 = int_to_ptr.hbm [resolvable:$true] %s726
          %732 = dma.vmem_to_hbm [thread:$0]  %s725, 256, %s727, %s680, 128, 256, 8
        $region64: #{tpu_custom_call.1} parent=35 // pred_fallthru
          _
        // Predicated region
        $region65: #{tpu_custom_call.1} parent=35 // pred_check
          %p733 = pneg %p237
        $region66: #{tpu_custom_call.1} parent=35 // pred_check_branch
          %735 = sbr.rel (%p733) target = $region68
        $region67: #{tpu_custom_call.1} parent=35 // pred_region
          %737 = vsyncadd %s685, 0
          %s738 = smul.addr %s37, 8
          %s739 = scalar_lea.hbm %s7, %s738
          %s740 = sshll.u32 %s688, 4
          %s741 = int_to_ptr.vmem [resolvable:$true] %s740
          %s742 = sshll.u32 %s739, 4
          %s743 = int_to_ptr.hbm [resolvable:$true] %s742
          %748 = dma.vmem_to_hbm [thread:$0]  %s741, 256, %s743, %s685, 128, 256, 8
        $region68: #{tpu_custom_call.1} parent=35 // pred_fallthru
          _
      $region36: #{tpu_custom_call.1} parent=5 // pred_fallthru
        _
      %p749 = scmp.le.s32.totalorder 2, %s32
      // Predicated region
      $region69: #{tpu_custom_call.1} parent=5 // pred_check
        %p750 = pneg %p749
      $region70: #{tpu_custom_call.1} parent=5 // pred_check_branch
        %752 = sbr.rel (%p750) target = $region72
      $region71: #{tpu_custom_call.1} parent=5 // pred_region
        %s753 = ssub.s32 %s32, 2
        // Predicated region
        $region73: #{tpu_custom_call.1} parent=71 // pred_check
          %p754 = pneg %p165
        $region74: #{tpu_custom_call.1} parent=71 // pred_check_branch
          %756 = sbr.rel (%p754) target = $region76
        $region75: #{tpu_custom_call.1} parent=71 // pred_region
          %s757 = sand.u32 %s150, 1
          %s758 = scalar_lea.sflag [#allocation4], %s757
          %s759 = sand.u32 %s150, 1
          %s760 = smul.addr %s759, 8
          %s761 = scalar_lea.vmem [#allocation10], %s760
          %763 = dma.done %s758, 128
        $region76: #{tpu_custom_call.1} parent=71 // pred_fallthru
          _
        // Predicated region
        $region77: #{tpu_custom_call.1} parent=71 // pred_check
          %p764 = pneg %p191
        $region78: #{tpu_custom_call.1} parent=71 // pred_check_branch
          %766 = sbr.rel (%p764) target = $region80
        $region79: #{tpu_custom_call.1} parent=71 // pred_region
          %s767 = sand.u32 %s38, 1
          %s768 = scalar_lea.sflag [#allocation12], %s767
          %s769 = sand.u32 %s176, 1
          %s770 = smul.addr %s769, 8
          %s771 = scalar_lea.vmem [#allocation11], %s770
          %773 = dma.done %s768, 128
        $region80: #{tpu_custom_call.1} parent=71 // pred_fallthru
          _
        // Predicated region
        $region81: #{tpu_custom_call.1} parent=71 // pred_check
          %p774 = pneg %p217
        $region82: #{tpu_custom_call.1} parent=71 // pred_check_branch
          %776 = sbr.rel (%p774) target = $region84
        $region83: #{tpu_custom_call.1} parent=71 // pred_region
          %s777 = sand.u32 %s38, 1
          %s778 = scalar_lea.sflag [#allocation12], %s777
          %s779 = sand.u32 %s202, 1
          %s780 = smul.addr %s779, 16
          %s781 = scalar_lea.vmem [#allocation13], %s780
          %783 = dma.done %s778, 256
        $region84: #{tpu_custom_call.1} parent=71 // pred_fallthru
          _
        // Predicated region
        $region85: #{tpu_custom_call.1} parent=71 // pred_check
          %p784 = pneg %p243
        $region86: #{tpu_custom_call.1} parent=71 // pred_check_branch
          %786 = sbr.rel (%p784) target = $region88
        $region87: #{tpu_custom_call.1} parent=71 // pred_region
          %s787 = sand.u32 %s228, 1
          %s788 = scalar_lea.sflag [#allocation15], %s787
          %s789 = sand.u32 %s228, 1
          %s790 = smul.addr %s789, 16
          %s791 = scalar_lea.vmem [#allocation14], %s790
          %793 = dma.done %s788, 256
        $region88: #{tpu_custom_call.1} parent=71 // pred_fallthru
          _
      $region72: #{tpu_custom_call.1} parent=5 // pred_fallthru
        _
    $region6: #{tpu_custom_call.1} parent=1 // loop_footer
      %s36 = sadd.s32 1, %s32
    $region7: #{tpu_custom_call.1} parent=1 // loop_footer_branch
      %31 = sbr.rel target = $region3
    $region8: #{tpu_custom_call.1} parent=1 // loop_exit
      _
    %794 = vsyncpa [#allocation3], 1
    %s795 = scalar_lea.sflag [#allocation3], 1
    %796 = vsyncpa %s795, 1
    %797 = vsyncpa [#allocation6], 1
    %s798 = scalar_lea.sflag [#allocation6], 1
    %799 = vsyncpa %s798, 1
    %800 = vsyncpa [#allocation9], 1
    %s801 = scalar_lea.sflag [#allocation9], 1
    %802 = vsyncpa %s801, 1
    %803 = vsyncpa [#allocation4], 1
    %s804 = scalar_lea.sflag [#allocation4], 1
    %805 = vsyncpa %s804, 1
    %806 = vsyncpa [#allocation12], 1
    %s807 = scalar_lea.sflag [#allocation12], 1
    %808 = vsyncpa %s807, 1
    %809 = vsyncpa [#allocation15], 1
    %s810 = scalar_lea.sflag [#allocation15], 1
    %811 = vsyncpa %s810, 1

</llo_original>
